<compile_context>
chip_gen: v5e
topology: v5e:2x2
jax: 0.10.0
libtpu: 0.0.40
codegen_flags: <defaults>
</compile_context>

<pallas_src>
import jax
import jax.numpy as jnp
from jax.experimental import pallas as pl
from jax.experimental.pallas import tpu as pltpu


def _make_kernel(tm, feat_resident):
    """Kernel: accumulate (mask @ features) over M tiles, normalize+tanh at the end."""

    def kernel(a_ref, deg_ref, f_ref, out_ref):
        m = pl.program_id(1)

        @pl.when(m == 0)
        def _():
            out_ref[...] = jnp.zeros_like(out_ref)

        # Exact 0/1 mask tile; cast to bf16 is a no-op if it already is bf16.
        a_tile = a_ref[...].astype(jnp.bfloat16)

        if feat_resident:
            # Whole feature table is VMEM-resident (constant block index):
            # slice the current M chunk out of it.
            start = pl.multiple_of(m * tm, tm)
            f_tile = f_ref[pl.ds(start, tm), :]
        else:
            f_tile = f_ref[...]
        f_tile = f_tile.astype(jnp.bfloat16)

        # out_ref is f32 and its block index is constant over the M axis, so it
        # is VMEM-resident across the reduction -> accumulate in place (MXU).
        out_ref[...] += jnp.dot(a_tile, f_tile, preferred_element_type=jnp.float32)

        @pl.when(m == pl.num_programs(1) - 1)
        def _():
            # Exact f32 mean + tanh epilogue (deg is an exact integer-valued f32).
            inv_deg = pl.reciprocal(deg_ref[...], approx=False)
            out_ref[...] = jnp.tanh(out_ref[...] * inv_deg)

    return kernel


def _tile_candidates(dim, align, cap):
    """Tile sizes that divide `dim`, are (8,128)-friendly, and are <= cap (descending)."""
    cands = []
    if dim <= cap:
        cands.append(dim)                       # full extent is always legal
    t = (min(cap, dim) // align) * align
    while t >= align:
        if dim % t == 0 and t not in cands:
            cands.append(t)
        t -= align
    if not cands:
        cands.append(dim)                       # fallback: no tiling along this dim
    return cands


def ego_encoder_forward(neigh_mask, deg, features, *, tn=None, tm=None,
                        vmem_limit_bytes=None):
    """tanh((neigh_mask @ features) / deg).

    neigh_mask: [N, M] exact 0/1 mask (bf16 recommended; any float dtype works)
    deg:        [N, 1] float32 neighbor counts (must be >= 1)
    features:   [M, D] node feature table
    """
    N, M = neigh_mask.shape
    Nd, one = deg.shape
    M2, D = features.shape
    assert M == M2 and Nd == N and one == 1

    a_bytes = neigh_mask.dtype.itemsize
    f_bytes = features.dtype.itemsize

    # --- generation-aware VMEM budget -------------------------------------
    try:
        vmem_cap = int(pltpu.get_tpu_info().vmem_capacity_bytes)
    except Exception:
        vmem_cap = 64 << 20                      # conservative: v7x per-TC VMEM
    budget = max(8 << 20, (vmem_cap * 3) // 8)   # ~24 MiB on v7x, ~48 MiB on v5e/v6e

    # Keep the whole [M, D] table resident if it is comfortably small.
    feat_resident = (M * D * f_bytes) <= budget // 4

    def vmem_est(tn_, tm_):
        a = 2 * tn_ * tm_ * a_bytes                                   # double-buffered A
        f = (2 * M * D * f_bytes) if feat_resident else (2 * tm_ * D * f_bytes)
        o = 2 * tn_ * D * 4                                           # f32 output block
        d = 2 * tn_ * 4                                               # degree block
        return a + f + o + d

    # --- tile selection: biggest tiles that fit the budget (shrink tm first) ---
    tn_cands = [tn] if tn is not None else _tile_candidates(N, 8, 512)
    tm_cands = [tm] if tm is not None else _tile_candidates(M, 128, 4096)
    tn_sel, tm_sel = tn_cands[-1], tm_cands[-1]
    found = False
    for tn_ in tn_cands:
        for tm_ in tm_cands:
            if vmem_est(tn_, tm_) <= budget:
                tn_sel, tm_sel = tn_, tm_
                found = True
                break
        if found:
            break
    tn, tm = tn_sel, tm_sel
    assert N % tn == 0, "N must be a multiple of the chosen N-tile"
    assert M % tm == 0, "M must be a multiple of the chosen M-tile"

    est = vmem_est(tn, tm)
    if vmem_limit_bytes is None and est > (14 << 20):
        # v5e default scoped VMEM is only 16 MiB; raise it (with headroom, below physical).
        vmem_limit_bytes = min(est + est // 4 + (2 << 20), vmem_cap - (4 << 20))

    grid = (N // tn, M // tm)

    in_specs = [
        pl.BlockSpec((tn, tm), lambda i, m: (i, m)),        # 0/1 neighbor-mask tile
        pl.BlockSpec((tn, 1), lambda i, m: (i, 0)),         # per-row degree (resident)
    ]
    if feat_resident:
        in_specs.append(pl.BlockSpec((M, D), lambda i, m: (0, 0)))   # DMAed once
    else:
        in_specs.append(pl.BlockSpec((tm, D), lambda i, m: (m, 0)))  # streamed per m-tile

    feat_streams = 1 if feat_resident else (N // tn)
    cost = pl.CostEstimate(
        flops=2 * N * M * D,
        transcendentals=N * D,                               # tanh epilogue
        bytes_accessed=(N * M * a_bytes + feat_streams * M * D * f_bytes
                        + N * 4 + N * D * 4),
    )

    compiler_kwargs = dict(dimension_semantics=("parallel", "arbitrary"))
    if vmem_limit_bytes is not None:
        compiler_kwargs["vmem_limit_bytes"] = int(vmem_limit_bytes)

    # TODO(synk): on v7x, verify the N axis shards across both TensorCores; switch to
    # pltpu.CORE_PARALLEL / explicit core split if one core sits idle for large N.
    # TODO(synk): for production sparse graphs, replace the dense mask with a
    # scalar-prefetched neighbor-list gather (O(nnz*D) HBM instead of O(N*M)), and
    # consider an int8 (v5e/v6e) or fp8 (v7x) mask dtype to halve mask bytes.
    out = pl.pallas_call(
        _make_kernel(tm, feat_resident),
        out_shape=jax.ShapeDtypeStruct((N, D), jnp.float32),
        grid_spec=pltpu.PrefetchScalarGridSpec(
            num_scalar_prefetch=0,
            grid=grid,
            in_specs=in_specs,
            out_specs=pl.BlockSpec((tn, D), lambda i, m: (i, 0)),
        ),
        compiler_params=pltpu.CompilerParams(**compiler_kwargs),
        cost_estimate=cost,
    )(neigh_mask, deg, features)
    return out


if __name__ == "__main__":
    key = jax.random.PRNGKey(0)
    k_feat, k_adj, k_w, k_nodes = jax.random.split(key, 4)

    M_graph = 256   # total nodes in the graph
    D = 32          # feature_dim
    E = 32          # embed_dim
    N = 8           # number of query (ego) nodes

    # node feature table ("self.features"); fed to the kernel in f32, cast per-tile
    features = jax.random.normal(k_feat, (M_graph, D), dtype=jnp.float32)

    # deterministic synthetic graph: sparse bernoulli adjacency + self-loops
    # (stands in for graph.neighbor_dict).  Built directly in bf16 (0/1 exact),
    # so there is no separate f32->bf16 cast pass in front of the kernel.
    adj = jax.random.bernoulli(k_adj, p=0.05, shape=(M_graph, M_graph))
    adj = jnp.logical_or(adj, jnp.eye(M_graph, dtype=bool))
    adj_bf = adj.astype(jnp.bfloat16)

    # query node ids (the `nodes` argument of forward)
    nodes = jax.random.randint(k_nodes, (N,), 0, M_graph)

    # plain-JAX glue for the python-dict lookup: raw 0/1 neighbor mask + exact
    # f32 degree vector (in real use deg = len(neighbor_dict[node]), i.e. free)
    neigh_mask = adj_bf[nodes]                                          # [N, M] 0/1 bf16
    deg = jnp.sum(neigh_mask, axis=1, keepdims=True, dtype=jnp.float32)
    deg = jnp.maximum(deg, 1.0)                                         # self-loops => >= 1

    # self.weight (xavier_uniform_) exists in the module but its matmul result is
    # discarded in forward -> intentionally NOT passed to the kernel (dead code).
    bound = (6.0 / (D + E)) ** 0.5
    _weight_unused = jax.random.uniform(k_w, (D, E), minval=-bound,
                                        maxval=bound, dtype=jnp.float32)

    out = ego_encoder_forward(neigh_mask, deg, features)
    out = jax.block_until_ready(out)

    # plain-JAX f32 reference of the exact reference semantics
    ref = jnp.tanh((neigh_mask.astype(jnp.float32) @ features) / deg)
    assert out.shape == (N, D), out.shape
    # features are cast to bf16 on the MXU path -> small tolerance
    assert jnp.allclose(out, ref, atol=2e-2, rtol=2e-2), (
        float(jnp.max(jnp.abs(out - ref))))

    print("KERNEL_OK")
</pallas_src>

<mosaic_0001>
module attributes {stable_mosaic.version = 11 : i64} {
  func.func @kernel(%arg0: i32, %arg1: i32, %arg2: memref<8x256xbf16, #tpu.memory_space<vmem>>, %arg3: memref<8x1xf32, #tpu.memory_space<vmem>>, %arg4: memref<256x32xf32, #tpu.memory_space<vmem>>, %arg5: memref<8x32xf32, #tpu.memory_space<vmem>>) attributes {dimension_semantics = [#tpu.dimension_semantics<parallel>, #tpu.dimension_semantics<arbitrary>], iteration_bounds = array<i64: 1, 1>, scalar_prefetch = 0 : i64, scratch_operands = 0 : i64, tpu.core_type = #tpu.core_type<tc>, window_params = [{transform_indices = @transform_0, window_bounds = array<i64: 8, 256>}, {transform_indices = @transform_1, window_bounds = array<i64: 8, 1>}, {pipeline_mode = #tpu.pipeline_mode<synchronous>, transform_indices = @transform_2, window_bounds = array<i64: 256, 32>}, {transform_indices = @transform_3, window_bounds = array<i64: 8, 32>}]} {
    %c0_i32 = arith.constant 0 : i32
    %0 = arith.cmpi eq, %arg1, %c0_i32 : i32
    %1 = arith.extui %0 : i1 to i32
    %c0_i32_0 = arith.constant 0 : i32
    %2 = arith.cmpi ne, %1, %c0_i32_0 : i32
    scf.if %2 {
      %cst_9 = arith.constant 0.000000e+00 : f32
      %16 = vector.broadcast %cst_9 : f32 to vector<8x32xf32>
      %c0_10 = arith.constant 0 : index
      %c0_11 = arith.constant 0 : index
      %17 = vector.load %arg5[%c0_10, %c0_11] : memref<8x32xf32, #tpu.memory_space<vmem>>, vector<8x32xf32>
      tpu.vector_store %arg5[%c0_10, %c0_11], %16 {strides = array<i32>} : memref<8x32xf32, #tpu.memory_space<vmem>>, vector<8x32xf32>,
    } else {
    }
    %c0 = arith.constant 0 : index
    %c0_1 = arith.constant 0 : index
    %3 = vector.load %arg2[%c0, %c0_1] : memref<8x256xbf16, #tpu.memory_space<vmem>>, vector<8x256xbf16>
    %c256_i32 = arith.constant 256 : i32
    %4 = arith.muli %arg1, %c256_i32 : i32
    %5 = tpu.assume_multiple %4, 256 : i32
    %6 = arith.index_cast %5 : i32 to index
    %c0_2 = arith.constant 0 : index
    %7 = vector.load %arg4[%6, %c0_2] : memref<256x32xf32, #tpu.memory_space<vmem>>, vector<256x32xf32>
    %8 = arith.truncf %7 : vector<256x32xf32> to vector<256x32xbf16>
    %c0_3 = arith.constant 0 : index
    %c0_4 = arith.constant 0 : index
    %9 = vector.load %arg5[%c0_3, %c0_4] : memref<8x32xf32, #tpu.memory_space<vmem>>, vector<8x32xf32>
    %cst = arith.constant dense<0.000000e+00> : vector<8x32xf32>
    %10 = tpu.matmul %3, %8, %cst {dimension_numbers = #tpu.dot_dimension_numbers<[1], [0], [0], [1], [0, 0, 1, 1], [], []>} : vector<8x256xbf16>, vector<256x32xbf16>, vector<8x32xf32> -> vector<8x32xf32>
    %11 = arith.addf %9, %10 : vector<8x32xf32>
    %c0_5 = arith.constant 0 : index
    %c0_6 = arith.constant 0 : index
    %12 = vector.load %arg5[%c0_5, %c0_6] : memref<8x32xf32, #tpu.memory_space<vmem>>, vector<8x32xf32>
    tpu.vector_store %arg5[%c0_5, %c0_6], %11 {strides = array<i32>} : memref<8x32xf32, #tpu.memory_space<vmem>>, vector<8x32xf32>,
    %c0_i32_7 = arith.constant 0 : i32
    %13 = arith.cmpi eq, %arg1, %c0_i32_7 : i32
    %14 = arith.extui %13 : i1 to i32
    %c0_i32_8 = arith.constant 0 : i32
    %15 = arith.cmpi ne, %14, %c0_i32_8 : i32
    scf.if %15 {
      %c0_9 = arith.constant 0 : index
      %c0_10 = arith.constant 0 : index
      %16 = vector.load %arg3[%c0_9, %c0_10] : memref<8x1xf32, #tpu.memory_space<vmem>>, vector<8x1xf32>
      %17 = tpu.reciprocal %16 : vector<8x1xf32> -> vector<8x1xf32>
      %c0_11 = arith.constant 0 : index
      %c0_12 = arith.constant 0 : index
      %18 = vector.load %arg5[%c0_11, %c0_12] : memref<8x32xf32, #tpu.memory_space<vmem>>, vector<8x32xf32>
      %19 = vector.broadcast %17 : vector<8x1xf32> to vector<8x32xf32>
      %20 = arith.mulf %18, %19 : vector<8x32xf32>
      %21 = math.tanh %20 : vector<8x32xf32>
      %c0_13 = arith.constant 0 : index
      %c0_14 = arith.constant 0 : index
      %22 = vector.load %arg5[%c0_13, %c0_14] : memref<8x32xf32, #tpu.memory_space<vmem>>, vector<8x32xf32>
      tpu.vector_store %arg5[%c0_13, %c0_14], %21 {strides = array<i32>} : memref<8x32xf32, #tpu.memory_space<vmem>>, vector<8x32xf32>,
    } else {
    }
    return
  }
  func.func @transform_0(%arg0: i32, %arg1: i32) -> (i32, i32) {
    %c0_i32 = arith.constant 0 : i32
    return %arg0, %arg1 : i32, i32
  }
  func.func @transform_1(%arg0: i32, %arg1: i32) -> (i32, i32) {
    %c0_i32 = arith.constant 0 : i32
    %c0_i32_0 = arith.constant 0 : i32
    return %arg0, %c0_i32 : i32, i32
  }
  func.func @transform_2(%arg0: i32, %arg1: i32) -> (i32, i32) {
    %c0_i32 = arith.constant 0 : i32
    %c0_i32_0 = arith.constant 0 : i32
    %c0_i32_1 = arith.constant 0 : i32
    return %c0_i32, %c0_i32_0 : i32, i32
  }
  func.func @transform_3(%arg0: i32, %arg1: i32) -> (i32, i32) {
    %c0_i32 = arith.constant 0 : i32
    %c0_i32_0 = arith.constant 0 : i32
    return %arg0, %c0_i32 : i32, i32
  }
}

</mosaic_0001>

<llo_original>
// kernel: tpu_custom_call.1
$region0: #{tpu_custom_call.1}
  #allocation0 [shape = 'u32[]', space=smem, size = 0x4, offset = 0x4, fixed_abs, tag = 'smem constant byte address 0x4 - core index']
  #allocation1 [shape = 'u32[72,128]{1,0:T(1,128)}', space=vmem, size = 0x9000, scoped, tag = 'internal scratch']
  %s0 = inlined_call_operand.vmem [shape: bf16[8,256], index: 0, kind: input, shape index: {}]
  %s1 = inlined_call_operand.vmem [shape: f32[8,1], index: 1, kind: input, shape index: {}]
  %s2 = inlined_call_operand.vmem [shape: f32[256,32], index: 2, kind: input, shape index: {}]
  %s3 = inlined_call_operand.hbm [shape: f32[8,32], index: 3, kind: output, shape index: {}]
  %s4 = sld [smem:[#allocation0]]
  $region30: #{tpu_custom_call.1} parent=0
    _
  %s6 = ssub.s32 1, %s4
  %s7 = scalar_select 0, %s6, %s4
  $region1: #{tpu_custom_call.1} parent=0
    #allocation2 [shape = 'u8[4096]{0}', space=vmem, size = 0x1000, scoped, tag = 'output window, operand 0, single buffered']
    #allocation3 [shape = 's32[1]{0}', space=sflag, size = 0x4, scoped, tag = 'scoped memory for tpu_custom_call.1']
    %8 = vsyncpa [#allocation3], 0
    // Predicated region
    $region2: #{tpu_custom_call.1} parent=1 // pred_check
      _
    $region3: #{tpu_custom_call.1} parent=1 // pred_check_branch
      %10 = sbr.rel (0) target = $region5
    $region4: #{tpu_custom_call.1} parent=1 // pred_region
      _
    $region5: #{tpu_custom_call.1} parent=1 // pred_fallthru
      _
    // Predicated region
    $region6: #{tpu_custom_call.1} parent=1 // pred_check
      _
    $region7: #{tpu_custom_call.1} parent=1 // pred_check_branch
      %12 = sbr.rel (0) target = $region9
    $region8: #{tpu_custom_call.1} parent=1 // pred_region
      _
    $region9: #{tpu_custom_call.1} parent=1 // pred_fallthru
      _
    // Predicated region
    $region10: #{tpu_custom_call.1} parent=1 // pred_check
      _
    $region11: #{tpu_custom_call.1} parent=1 // pred_check_branch
      %14 = sbr.rel (0) target = $region13
    $region12: #{tpu_custom_call.1} parent=1 // pred_region
      _
    $region13: #{tpu_custom_call.1} parent=1 // pred_fallthru
      _
    %p15 = scmp.eq.s32.totalorder 0, 0
    // Predicated region
    $region14: #{tpu_custom_call.1} parent=1 // pred_check
      %p16 = pneg %p15
    $region15: #{tpu_custom_call.1} parent=1 // pred_check_branch
      %18 = sbr.rel (%p16) target = $region17
    $region16: #{tpu_custom_call.1} parent=1 // pred_region
      %vm19 = vcmask 261120
      %20 = vst.msk [vmem:[#allocation2] sm:$0xff] %vm19, 0.0
    $region17: #{tpu_custom_call.1} parent=1 // pred_fallthru
      _
    %v21 = vld [vmem:[%s0] sm:$0xff]
    %s22 = smul.u32 0, 256
    %s23 = scalar_lea.vmem %s2, %s22
    %v24 = vld [vmem:[%s23] sm:$0xff]
    %v25 = vld [vmem:[%s23 + $0x8] sm:$0xff]
    %v26 = vld [vmem:[%s23 + $0x10] sm:$0xff]
    %v27 = vld [vmem:[%s23 + $0x18] sm:$0xff]
    %v28 = vld [vmem:[%s23 + $0x20] sm:$0xff]
    %v29 = vld [vmem:[%s23 + $0x28] sm:$0xff]
    %v30 = vld [vmem:[%s23 + $0x30] sm:$0xff]
    %v31 = vld [vmem:[%s23 + $0x38] sm:$0xff]
    %v32 = vld [vmem:[%s23 + $0x40] sm:$0xff]
    %v33 = vld [vmem:[%s23 + $0x48] sm:$0xff]
    %v34 = vld [vmem:[%s23 + $0x50] sm:$0xff]
    %v35 = vld [vmem:[%s23 + $0x58] sm:$0xff]
    %v36 = vld [vmem:[%s23 + $0x60] sm:$0xff]
    %v37 = vld [vmem:[%s23 + $0x68] sm:$0xff]
    %v38 = vld [vmem:[%s23 + $0x70] sm:$0xff]
    %v39 = vld [vmem:[%s23 + $0x78] sm:$0xff]
    %v40 = vld [vmem:[%s23 + $0x80] sm:$0xff]
    %v41 = vld [vmem:[%s23 + $0x88] sm:$0xff]
    %v42 = vld [vmem:[%s23 + $0x90] sm:$0xff]
    %v43 = vld [vmem:[%s23 + $0x98] sm:$0xff]
    %v44 = vld [vmem:[%s23 + $0xa0] sm:$0xff]
    %v45 = vld [vmem:[%s23 + $0xa8] sm:$0xff]
    %v46 = vld [vmem:[%s23 + $0xb0] sm:$0xff]
    %v47 = vld [vmem:[%s23 + $0xb8] sm:$0xff]
    %v48 = vld [vmem:[%s23 + $0xc0] sm:$0xff]
    %v49 = vld [vmem:[%s23 + $0xc8] sm:$0xff]
    %v50 = vld [vmem:[%s23 + $0xd0] sm:$0xff]
    %v51 = vld [vmem:[%s23 + $0xd8] sm:$0xff]
    %v52 = vld [vmem:[%s23 + $0xe0] sm:$0xff]
    %v53 = vld [vmem:[%s23 + $0xe8] sm:$0xff]
    %v54 = vld [vmem:[%s23 + $0xf0] sm:$0xff]
    %v55 = vld [vmem:[%s23 + $0xf8] sm:$0xff]
    %v56 = vpack.c.bf16 %v25, %v24
    %v57 = vpack.c.bf16 %v27, %v26
    %v58 = vpack.c.bf16 %v29, %v28
    %v59 = vpack.c.bf16 %v31, %v30
    %v60 = vpack.c.bf16 %v33, %v32
    %v61 = vpack.c.bf16 %v35, %v34
    %v62 = vpack.c.bf16 %v37, %v36
    %v63 = vpack.c.bf16 %v39, %v38
    %v64 = vpack.c.bf16 %v41, %v40
    %v65 = vpack.c.bf16 %v43, %v42
    %v66 = vpack.c.bf16 %v45, %v44
    %v67 = vpack.c.bf16 %v47, %v46
    %v68 = vpack.c.bf16 %v49, %v48
    %v69 = vpack.c.bf16 %v51, %v50
    %v70 = vpack.c.bf16 %v53, %v52
    %v71 = vpack.c.bf16 %v55, %v54
    %v72 = vld [vmem:[#allocation2] sm:$0xff]
    %v74 = vunpack.c.l.b16 %v21
    %v75 = vunpack.c.h.b16 %v21
    %v76 = vpack.c.b16 %v74, %v74
    %v77 = vpack.c.b16 %v75, %v75
    %80 = vmatpush.bf16.msra.mxu0 %v63
    %81 = vmatpush.bf16.msra.mxu0 %v62
    %82 = vmatpush.bf16.msra.mxu0 %v61
    %83 = vmatpush.bf16.msra.mxu0 %v60
    %84 = vmatpush.bf16.msra.mxu0 %v59
    %85 = vmatpush.bf16.msra.mxu0 %v58
    %86 = vmatpush.bf16.msra.mxu0 %v57
    %87 = vmatpush.bf16.msra.mxu0 %v56
    %88 = vmatmul.bf16.gmra.mxu0 %v76
    %v89 = vpop.f32.mrf.mxu0
    %v90 = vadd.f32 0.0, %v89
    %v91 = vpop.f32.mrf.mxu0
    %92 = vdwg.mxu0
    %93 = vmatpush.bf16.msra.mxu0 %v71
    %94 = vmatpush.bf16.msra.mxu0 %v70
    %95 = vmatpush.bf16.msra.mxu0 %v69
    %96 = vmatpush.bf16.msra.mxu0 %v68
    %97 = vmatpush.bf16.msra.mxu0 %v67
    %98 = vmatpush.bf16.msra.mxu0 %v66
    %99 = vmatpush.bf16.msra.mxu0 %v65
    %100 = vmatpush.bf16.msra.mxu0 %v64
    %101 = vmatmul.bf16.gmra.mxu0 %v77
    %v102 = vpop.f32.mrf.mxu0
    %v103 = vadd.f32 %v90, %v102
    %v104 = vpop.f32.mrf.mxu0
    %105 = vdwg.mxu0
    %v106 = vadd.f32 %v72, %v103
    %vm107 = vcmask 261120
    %108 = vst.msk [vmem:[#allocation2] sm:$0xff] %vm107, %v106
    // Predicated region
    $region18: #{tpu_custom_call.1} parent=1 // pred_check
      %p109 = pneg %p15
    $region19: #{tpu_custom_call.1} parent=1 // pred_check_branch
      %111 = sbr.rel (%p109) target = $region21
    $region20: #{tpu_custom_call.1} parent=1 // pred_region
      %v112 = vld [vmem:[%s1] sm:$0xff]
      %v113 = vrcp.pop %v112
      %v114 = vmul.f32 %v112, %v113
      %v115 = vsub.f32 1.0, %v114
      %v116 = vmul.f32 %v113, %v115
      %v117 = vadd.f32 %v113, %v116
      %vm118 = vweird.f32 %v112
      %vm119 = vweird.f32 %v113
      %vm120 = vmor %vm118, %vm119
      %v121 = vsel %vm120, %v113, %v117
      %v122 = vand.u32 2147483647, %v112
      %vm123 = vcmp.eq.f32.partialorder %v122, 8.507059e+37
      %v124 = vand.u32 %v112, 2147483648
      %v125 = vor.u32 1.1754944e-38, %v124
      %v126 = vsel %vm123, %v125, %v121
      %v127 = vld [vmem:[#allocation2] sm:$0xff]
      %129 = vset.pattern.permute.xlu0 0
      %130 = vperm.xlu0 %129, %v126
      %v131 = vpop.permute.xlu0 %130
      %v133 = vmul.f32 %v127, %v131
      %v134 = vtanh.pop %v133
      %135 = vst.msk [vmem:[#allocation2] sm:$0xff] %vm107, %v134
    $region21: #{tpu_custom_call.1} parent=1 // pred_fallthru
      _
    // Predicated region
    $region22: #{tpu_custom_call.1} parent=1 // pred_check
      _
    $region23: #{tpu_custom_call.1} parent=1 // pred_check_branch
      %137 = sbr.rel (0) target = $region25
    $region24: #{tpu_custom_call.1} parent=1 // pred_region
      %139 = vsyncadd [#allocation3], 0
      %s141 = sshll.u32 [#allocation2], 4
      %s142 = int_to_ptr.vmem [resolvable:$true] %s141
      %s143 = sshll.u32 %s3, 4
      %s144 = int_to_ptr.hbm [resolvable:$true] %s143
      %146 = dma.vmem_to_hbm [thread:$0]  %s142, 128, %s144, [#allocation3]
    $region25: #{tpu_custom_call.1} parent=1 // pred_fallthru
      _
    // Predicated region
    $region26: #{tpu_custom_call.1} parent=1 // pred_check
      _
    $region27: #{tpu_custom_call.1} parent=1 // pred_check_branch
      %148 = sbr.rel (0) target = $region29
    $region28: #{tpu_custom_call.1} parent=1 // pred_region
      %150 = dma.done [#allocation3], 128
    $region29: #{tpu_custom_call.1} parent=1 // pred_fallthru
      _
    %151 = vsyncpa [#allocation3], 1

</llo_original>
